<compile_context>
chip_gen: v6e
topology: v6e:2x2x1
jax: 0.10.0
libtpu: 0.0.40
codegen_flags: <defaults>
</compile_context>

<pallas_src>
import functools

import jax
import jax.numpy as jnp
from jax.experimental import pallas as pl
from jax.experimental.pallas import tpu as pltpu


IN_DIM = 20
HIDDEN_DIM = 256
OUT_DIM = 256  # declared out_features of the "output" layer


def mlp_kernel(x_ref, w1_ref, b1_ref, w2_ref, b2_ref, o_ref):
    # Both matmuls on the MXU in bf16 with f32 accumulation; bias adds / ReLU
    # stay in f32 on the VPU (safe on v5e, which has no bf16 VPU path).
    x = x_ref[...].astype(jnp.bfloat16)                              # (TB, 20)
    h = jnp.dot(x, w1_ref[...], preferred_element_type=jnp.float32)  # (TB, 256)
    h = jnp.maximum(h + b1_ref[...], 0.0)
    y = jnp.dot(h.astype(jnp.bfloat16), w2_ref[...],
                preferred_element_type=jnp.float32)                  # (TB, 256)
    o_ref[...] = (y + b2_ref[...]).astype(o_ref.dtype)


def _round_up(n, m):
    return ((n + m - 1) // m) * m


def _pick_batch_tile(batch, block_b):
    # At least 2 grid steps whenever batch > 8 so v7x's two TensorCores both get
    # work; tile rows are a multiple of the 8-row sublane granule.
    half = _round_up(max(-(-batch // 2), 1), 8)
    return max(8, min(block_b, half))


@functools.partial(jax.jit, static_argnames=("block_b", "out_dtype"))
def mlp_forward(x, w1, b1, w2, b2, *, block_b=4096, out_dtype=jnp.bfloat16):
    """x: (B,20) f32; w1: (20,256) bf16; b1: (1,256) f32; w2: (256,256) bf16; b2: (1,256) f32."""
    B = x.shape[0]
    if B < 8:
        # Tiny-batch path only: pad to one sublane (negligible bytes). Large,
        # non-aligned batches rely on Pallas tail-block masking instead.
        x = jnp.pad(x, ((0, 8 - B), (0, 0)))
    Bp = x.shape[0]

    tb = _pick_batch_tile(Bp, block_b)
    grid = (pl.cdiv(Bp, tb),)

    out_bytes = jnp.dtype(out_dtype).itemsize
    weight_bytes = ((IN_DIM * HIDDEN_DIM + HIDDEN_DIM * OUT_DIM) * 2
                    + (HIDDEN_DIM + OUT_DIM) * 4)
    cost = pl.CostEstimate(
        flops=2 * B * (IN_DIM * HIDDEN_DIM + HIDDEN_DIM * OUT_DIM),
        bytes_accessed=B * (IN_DIM * 4 + OUT_DIM * out_bytes) + weight_bytes,
        transcendentals=0,
    )

    out = pl.pallas_call(
        mlp_kernel,
        out_shape=jax.ShapeDtypeStruct((Bp, OUT_DIM), out_dtype),
        grid=grid,
        in_specs=[
            # Streamed per batch tile (double-buffered by the pipeline).
            pl.BlockSpec((tb, IN_DIM), lambda i: (i, 0)),
            # Weights / biases: constant index_map -> DMA'd once, VMEM-resident.
            pl.BlockSpec((IN_DIM, HIDDEN_DIM), lambda i: (0, 0)),
            pl.BlockSpec((1, HIDDEN_DIM), lambda i: (0, 0)),
            pl.BlockSpec((HIDDEN_DIM, OUT_DIM), lambda i: (0, 0)),
            pl.BlockSpec((1, OUT_DIM), lambda i: (0, 0)),
        ],
        out_specs=pl.BlockSpec((tb, OUT_DIM), lambda i: (i, 0)),
        compiler_params=pltpu.CompilerParams(
            dimension_semantics=("parallel",),
            # Explicit budget (~9 MiB used at tb=4096): comfortably above what we
            # need, comfortably below v7x's 64 MiB physical VMEM.
            vmem_limit_bytes=32 * 1024 * 1024,
        ),
        cost_estimate=cost,
    )(x, w1, b1, w2, b2)

    return out if Bp == B else out[:B]


def init_params(key):
    # Deterministic init mimicking torch.nn.Linear: U(-1/sqrt(in), 1/sqrt(in)).
    k1, k2, k3, k4 = jax.random.split(key, 4)
    bound1 = 1.0 / jnp.sqrt(IN_DIM)
    bound2 = 1.0 / jnp.sqrt(HIDDEN_DIM)
    w1 = jax.random.uniform(k1, (IN_DIM, HIDDEN_DIM), jnp.float32,
                            -bound1, bound1).astype(jnp.bfloat16)
    b1 = jax.random.uniform(k2, (1, HIDDEN_DIM), jnp.float32, -bound1, bound1)
    w2 = jax.random.uniform(k3, (HIDDEN_DIM, OUT_DIM), jnp.float32,
                            -bound2, bound2).astype(jnp.bfloat16)
    b2 = jax.random.uniform(k4, (1, OUT_DIM), jnp.float32, -bound2, bound2)
    return w1, b1, w2, b2


if __name__ == "__main__":
    key = jax.random.PRNGKey(0)
    kx, kp = jax.random.split(key)
    w1, b1, w2, b2 = init_params(kp)

    def reference(xin):
        # Pure-JAX reference emulating the kernel's bf16-input / f32-accumulate matmuls.
        w1f = w1.astype(jnp.float32)
        w2f = w2.astype(jnp.float32)
        xb = xin.astype(jnp.bfloat16).astype(jnp.float32)
        h = jnp.maximum(xb @ w1f + b1, 0.0)
        return h.astype(jnp.bfloat16).astype(jnp.float32) @ w2f + b2

    # Literal case from the source script: X = torch.randn(size=(2, 20)).
    x = jax.random.normal(kx, (2, IN_DIM), jnp.float32)
    out = mlp_forward(x, w1, b1, w2, b2)
    jax.block_until_ready(out)
    assert out.shape == (2, OUT_DIM)
    assert out.dtype == jnp.bfloat16
    assert jnp.allclose(out.astype(jnp.float32), reference(x), atol=2e-2, rtol=2e-2)

    # Non-aligned batch: exercises the multi-step grid + masked tail block
    # (no jnp.pad of x, no garbage rows in the returned output).
    x2 = jax.random.normal(kx, (50, IN_DIM), jnp.float32)
    out2 = mlp_forward(x2, w1, b1, w2, b2)
    jax.block_until_ready(out2)
    assert out2.shape == (50, OUT_DIM)
    assert jnp.allclose(out2.astype(jnp.float32), reference(x2), atol=2e-2, rtol=2e-2)

    print("KERNEL_OK")
</pallas_src>

<mosaic_0001>
module attributes {stable_mosaic.version = 11 : i64} {
  func.func @mlp_kernel(%arg0: i32, %arg1: memref<8x20xf32, #tpu.memory_space<vmem>>, %arg2: memref<20x256xbf16, #tpu.memory_space<vmem>>, %arg3: memref<1x256xf32, #tpu.memory_space<vmem>>, %arg4: memref<256x256xbf16, #tpu.memory_space<vmem>>, %arg5: memref<1x256xf32, #tpu.memory_space<vmem>>, %arg6: memref<8x256xbf16, #tpu.memory_space<vmem>>) attributes {dimension_semantics = [#tpu.dimension_semantics<parallel>], iteration_bounds = array<i64: 1>, scalar_prefetch = 0 : i64, scratch_operands = 0 : i64, tpu.core_type = #tpu.core_type<tc>, window_params = [{transform_indices = @transform_0, window_bounds = array<i64: 8, 20>}, {pipeline_mode = #tpu.pipeline_mode<synchronous>, transform_indices = @transform_1, window_bounds = array<i64: 20, 256>}, {pipeline_mode = #tpu.pipeline_mode<synchronous>, transform_indices = @transform_2, window_bounds = array<i64: 1, 256>}, {pipeline_mode = #tpu.pipeline_mode<synchronous>, transform_indices = @transform_3, window_bounds = array<i64: 256, 256>}, {pipeline_mode = #tpu.pipeline_mode<synchronous>, transform_indices = @transform_4, window_bounds = array<i64: 1, 256>}, {transform_indices = @transform_5, window_bounds = array<i64: 8, 256>}]} {
    %c0 = arith.constant 0 : index
    %c0_0 = arith.constant 0 : index
    %0 = vector.load %arg1[%c0, %c0_0] : memref<8x20xf32, #tpu.memory_space<vmem>>, vector<8x20xf32>
    %1 = arith.truncf %0 : vector<8x20xf32> to vector<8x20xbf16>
    %c0_1 = arith.constant 0 : index
    %c0_2 = arith.constant 0 : index
    %2 = vector.load %arg2[%c0_1, %c0_2] : memref<20x256xbf16, #tpu.memory_space<vmem>>, vector<20x256xbf16>
    %cst = arith.constant dense<0.000000e+00> : vector<8x256xf32>
    %3 = tpu.matmul %1, %2, %cst {dimension_numbers = #tpu.dot_dimension_numbers<[1], [0], [0], [1], [0, 0, 1, 1], [], []>} : vector<8x20xbf16>, vector<20x256xbf16>, vector<8x256xf32> -> vector<8x256xf32>
    %c0_3 = arith.constant 0 : index
    %c0_4 = arith.constant 0 : index
    %4 = vector.load %arg3[%c0_3, %c0_4] : memref<1x256xf32, #tpu.memory_space<vmem>>, vector<1x256xf32>
    %5 = vector.broadcast %4 : vector<1x256xf32> to vector<8x256xf32>
    %6 = arith.addf %3, %5 : vector<8x256xf32>
    %cst_5 = arith.constant 0.000000e+00 : f32
    %7 = vector.broadcast %cst_5 : f32 to vector<8x256xf32>
    %8 = arith.maximumf %6, %7 : vector<8x256xf32>
    %9 = arith.truncf %8 : vector<8x256xf32> to vector<8x256xbf16>
    %c0_6 = arith.constant 0 : index
    %c0_7 = arith.constant 0 : index
    %10 = vector.load %arg4[%c0_6, %c0_7] : memref<256x256xbf16, #tpu.memory_space<vmem>>, vector<256x256xbf16>
    %cst_8 = arith.constant dense<0.000000e+00> : vector<8x256xf32>
    %11 = tpu.matmul %9, %10, %cst_8 {dimension_numbers = #tpu.dot_dimension_numbers<[1], [0], [0], [1], [0, 0, 1, 1], [], []>} : vector<8x256xbf16>, vector<256x256xbf16>, vector<8x256xf32> -> vector<8x256xf32>
    %c0_9 = arith.constant 0 : index
    %c0_10 = arith.constant 0 : index
    %12 = vector.load %arg5[%c0_9, %c0_10] : memref<1x256xf32, #tpu.memory_space<vmem>>, vector<1x256xf32>
    %13 = vector.broadcast %12 : vector<1x256xf32> to vector<8x256xf32>
    %14 = arith.addf %11, %13 : vector<8x256xf32>
    %15 = arith.truncf %14 : vector<8x256xf32> to vector<8x256xbf16>
    %c0_11 = arith.constant 0 : index
    %c0_12 = arith.constant 0 : index
    %16 = vector.load %arg6[%c0_11, %c0_12] : memref<8x256xbf16, #tpu.memory_space<vmem>>, vector<8x256xbf16>
    tpu.vector_store %arg6[%c0_11, %c0_12], %15 {strides = array<i32>} : memref<8x256xbf16, #tpu.memory_space<vmem>>, vector<8x256xbf16>,
    return
  }
  func.func @transform_0(%arg0: i32) -> (i32, i32) {
    %c0_i32 = arith.constant 0 : i32
    %c0_i32_0 = arith.constant 0 : i32
    return %arg0, %c0_i32 : i32, i32
  }
  func.func @transform_1(%arg0: i32) -> (i32, i32) {
    %c0_i32 = arith.constant 0 : i32
    %c0_i32_0 = arith.constant 0 : i32
    %c0_i32_1 = arith.constant 0 : i32
    return %c0_i32, %c0_i32_0 : i32, i32
  }
  func.func @transform_2(%arg0: i32) -> (i32, i32) {
    %c0_i32 = arith.constant 0 : i32
    %c0_i32_0 = arith.constant 0 : i32
    %c0_i32_1 = arith.constant 0 : i32
    return %c0_i32, %c0_i32_0 : i32, i32
  }
  func.func @transform_3(%arg0: i32) -> (i32, i32) {
    %c0_i32 = arith.constant 0 : i32
    %c0_i32_0 = arith.constant 0 : i32
    %c0_i32_1 = arith.constant 0 : i32
    return %c0_i32, %c0_i32_0 : i32, i32
  }
  func.func @transform_4(%arg0: i32) -> (i32, i32) {
    %c0_i32 = arith.constant 0 : i32
    %c0_i32_0 = arith.constant 0 : i32
    %c0_i32_1 = arith.constant 0 : i32
    return %c0_i32, %c0_i32_0 : i32, i32
  }
  func.func @transform_5(%arg0: i32) -> (i32, i32) {
    %c0_i32 = arith.constant 0 : i32
    %c0_i32_0 = arith.constant 0 : i32
    return %arg0, %c0_i32 : i32, i32
  }
}

</mosaic_0001>

<llo_original>
// kernel: mlp_forward.1
$region0: #{mlp_forward.1}
  #allocation0 [shape = 'u32[]', space=smem, size = 0x4, offset = 0x4, fixed_abs, tag = 'smem constant byte address 0x4 - core index']
  #allocation1 [shape = 'u32[144,128]{1,0:T(1,128)}', space=vmem, size = 0x12000, scoped, tag = 'internal scratch']
  %s0 = inlined_call_operand.vmem [shape: f32[8,20], index: 0, kind: input, shape index: {}]
  %s1 = inlined_call_operand.hbm [shape: bf16[20,256], index: 1, kind: input, shape index: {}]
  %s2 = inlined_call_operand.vmem [shape: f32[1,256], index: 2, kind: input, shape index: {}]
  %s3 = inlined_call_operand.hbm [shape: bf16[256,256], index: 3, kind: input, shape index: {}]
  %s4 = inlined_call_operand.vmem [shape: f32[1,256], index: 4, kind: input, shape index: {}]
  %s5 = inlined_call_operand.vmem [shape: bf16[8,256], index: 5, kind: output, shape index: {}]
  %s6 = sld [smem:[#allocation0]]
  $region38: #{mlp_forward.1} parent=0
    _
  %s8 = ssub.s32 1, %s6
  %s9 = scalar_select 0, %s8, %s6
  $region1: #{mlp_forward.1} parent=0
    #allocation2 [shape = 'u8[12288]{0}', space=vmem, size = 0x3000, scoped, tag = 'input window, operand 1, single buffered']
    #allocation3 [shape = 's32[1]{0}', space=sflag, size = 0x4, scoped, tag = 'scoped memory for mlp_forward.1']
    #allocation4 [shape = 'u8[131072]{0}', space=vmem, size = 0x20000, scoped, tag = 'input window, operand 3, single buffered']
    #allocation5 [shape = 's32[1]{0}', space=sflag, size = 0x4, scoped, tag = 'scoped memory for mlp_forward.1']
    %10 = vsyncpa [#allocation3], 0
    %11 = vsyncpa [#allocation5], 0
    // Predicated region
    $region2: #{mlp_forward.1} parent=1 // pred_check
      _
    $region3: #{mlp_forward.1} parent=1 // pred_check_branch
      %13 = sbr.rel (0) target = $region5
    $region4: #{mlp_forward.1} parent=1 // pred_region
      _
    $region5: #{mlp_forward.1} parent=1 // pred_fallthru
      _
    // Predicated region
    $region6: #{mlp_forward.1} parent=1 // pred_check
      _
    $region7: #{mlp_forward.1} parent=1 // pred_check_branch
      %15 = sbr.rel (0) target = $region9
    $region8: #{mlp_forward.1} parent=1 // pred_region
      %s17 = ssub.s32 384, 384
      %18 = vsyncadd [#allocation3], %s17
      %s19 = sshll.u32 [#allocation2], 4
      %s20 = int_to_ptr.vmem [resolvable:$true] %s19
      %25 = dma.hbm_to_vmem [thread:$0]  %s1, 384, %s20, [#allocation3], 128, 128, 8
    $region9: #{mlp_forward.1} parent=1 // pred_fallthru
      _
    // Predicated region
    $region10: #{mlp_forward.1} parent=1 // pred_check
      _
    $region11: #{mlp_forward.1} parent=1 // pred_check_branch
      %27 = sbr.rel (0) target = $region13
    $region12: #{mlp_forward.1} parent=1 // pred_region
      _
    $region13: #{mlp_forward.1} parent=1 // pred_fallthru
      _
    // Predicated region
    $region14: #{mlp_forward.1} parent=1 // pred_check
      _
    $region15: #{mlp_forward.1} parent=1 // pred_check_branch
      %29 = sbr.rel (0) target = $region17
    $region16: #{mlp_forward.1} parent=1 // pred_region
      %s31 = ssub.s32 4096, 4096
      %32 = vsyncadd [#allocation5], %s31
      %s33 = sshll.u32 [#allocation4], 4
      %s34 = int_to_ptr.vmem [resolvable:$true] %s33
      %39 = dma.hbm_to_vmem [thread:$0]  %s3, 4096, %s34, [#allocation5], 128, 128, 8
    $region17: #{mlp_forward.1} parent=1 // pred_fallthru
      _
    // Predicated region
    $region18: #{mlp_forward.1} parent=1 // pred_check
      _
    $region19: #{mlp_forward.1} parent=1 // pred_check_branch
      %41 = sbr.rel (0) target = $region21
    $region20: #{mlp_forward.1} parent=1 // pred_region
      _
    $region21: #{mlp_forward.1} parent=1 // pred_fallthru
      _
    // Predicated region
    $region22: #{mlp_forward.1} parent=1 // pred_check
      _
    $region23: #{mlp_forward.1} parent=1 // pred_check_branch
      %43 = sbr.rel (0) target = $region25
    $region24: #{mlp_forward.1} parent=1 // pred_region
      %44 = dma.done [#allocation3], 384
    $region25: #{mlp_forward.1} parent=1 // pred_fallthru
      _
    // Predicated region
    $region26: #{mlp_forward.1} parent=1 // pred_check
      _
    $region27: #{mlp_forward.1} parent=1 // pred_check_branch
      %46 = sbr.rel (0) target = $region29
    $region28: #{mlp_forward.1} parent=1 // pred_region
      %47 = dma.done [#allocation5], 4096
    $region29: #{mlp_forward.1} parent=1 // pred_fallthru
      _
    %v49 = vld [vmem:[%s0] sm:$0xff]
    %v50 = vpack.c.bf16 %v49, %v49
    %v51 = vld [vmem:[#allocation2] sm:$0xff]
    %v52 = vld [vmem:[#allocation2 + $0x8] sm:$0xff]
    %v53 = vld [vmem:[#allocation2 + $0x10] sm:$0x33]
    %v54 = vld [vmem:[%s2] sm:$0x3]
    %v56 = vlaneseq
    %v57 = vshrl.u32 %v56, 7
    %v58 = vsub.s32 0, %v57
    %v59 = vrot.slane %v54, %v58
    %v60 = vlaneseq
    %v61 = vshrl.u32 %v60, 7
    %v62 = vsub.s32 1, %v61
    %v63 = vrot.slane %v54, %v62
    %v69 = vunpack.c.l.b16 %v51
    %v70 = vunpack.c.h.b16 %v51
    %v71 = vunpack.c.l.b16 %v52
    %v72 = vunpack.c.h.b16 %v52
    %v73 = vunpack.c.l.b16 %v53
    %v74 = vunpack.c.h.b16 %v53
    %v75 = vpack.c.b16 %v71, %v69
    %v76 = vpack.c.b16 %v72, %v70
    %v77 = vpack.c.b16 %v73, %v73
    %v78 = vpack.c.b16 %v74, %v74
    %vm81 = vcmask 162816
    %v83 = vsel %vm81, %v50, 0
    %vm85 = vcmask 1041408
    %v87 = vsel %vm85, %v77, 0
    %v90 = vsel %vm85, %v78, 0
    %92 = vmatprep.subr.bf16.mxu0 0
    %93 = vmatpush1.bf16.msra.mxu0 0
    %94 = vmatprep.subr.bf16.mxu0 0
    %95 = vmatpush1.bf16.msra.mxu0 0
    %96 = vmatprep.subr.bf16.mxu0 0
    %97 = vmatpush1.bf16.msra.mxu0 0
    %98 = vmatprep.subr.bf16.mxu0 0
    %99 = vmatpush1.bf16.msra.mxu0 0
    %100 = vmatprep.subr.bf16.mxu0 0
    %101 = vmatpush1.bf16.msra.mxu0 0
    %102 = vmatprep.subr.bf16.mxu0 0
    %103 = vmatpush1.bf16.msra.mxu0 0
    %104 = vmatprep.subr.bf16.mxu0 %v90
    %105 = vmatpush1.bf16.msra.mxu0 %v87
    %106 = vmatprep.subr.bf16.mxu0 %v76
    %107 = vmatpush1.bf16.msra.mxu0 %v75
    %108 = vmatprep.subr.bf16.mxu0 0
    %109 = vmatpush2.bf16.msra.mxu0 0
    %110 = vmatprep.subr.bf16.mxu0 0
    %111 = vmatpush2.bf16.msra.mxu0 0
    %112 = vmatprep.subr.bf16.mxu0 0
    %113 = vmatpush2.bf16.msra.mxu0 0
    %114 = vmatprep.subr.bf16.mxu0 0
    %115 = vmatpush2.bf16.msra.mxu0 0
    %116 = vmatprep.subr.bf16.mxu0 0
    %117 = vmatpush2.bf16.msra.mxu0 0
    %118 = vmatprep.subr.bf16.mxu0 0
    %119 = vmatpush2.bf16.msra.mxu0 0
    %120 = vmatprep.subr.bf16.mxu0 0
    %121 = vmatpush2.bf16.msra.mxu0 0
    %122 = vmatprep.subr.bf16.mxu0 0
    %123 = vmatpush2.bf16.msra.mxu0 0
    %124 = vmatprep.mubr.bf16.mxu0 0
    %125 = vmatmul.mubr.bf16.gmra.mxu0 %v83
    %v126 = vpop.f32.mrf.mxu0
    %v127 = vadd.f32 %v59, %v126
    %v128 = vpop.f32.mrf.mxu0
    %v129 = vadd.f32 %v63, %v128
    %v130 = vpop.f32.mrf.mxu0
    %v131 = vpop.f32.mrf.mxu0
    %132 = vdwg.mxu0
    %v133 = vmax.f32 %v127, 0.0
    %v134 = vmax.f32 %v129, 0.0
    %v135 = vpack.c.bf16 %v133, %v133
    %v136 = vpack.c.bf16 %v134, %v134
    %v137 = vld [vmem:[#allocation4] sm:$0xff]
    %v138 = vld [vmem:[#allocation4 + $0x8] sm:$0xff]
    %v139 = vld [vmem:[#allocation4 + $0x10] sm:$0xff]
    %v140 = vld [vmem:[#allocation4 + $0x18] sm:$0xff]
    %v141 = vld [vmem:[#allocation4 + $0x20] sm:$0xff]
    %v142 = vld [vmem:[#allocation4 + $0x28] sm:$0xff]
    %v143 = vld [vmem:[#allocation4 + $0x30] sm:$0xff]
    %v144 = vld [vmem:[#allocation4 + $0x38] sm:$0xff]
    %v145 = vld [vmem:[#allocation4 + $0x40] sm:$0xff]
    %v146 = vld [vmem:[#allocation4 + $0x48] sm:$0xff]
    %v147 = vld [vmem:[#allocation4 + $0x50] sm:$0xff]
    %v148 = vld [vmem:[#allocation4 + $0x58] sm:$0xff]
    %v149 = vld [vmem:[#allocation4 + $0x60] sm:$0xff]
    %v150 = vld [vmem:[#allocation4 + $0x68] sm:$0xff]
    %v151 = vld [vmem:[#allocation4 + $0x70] sm:$0xff]
    %v152 = vld [vmem:[#allocation4 + $0x78] sm:$0xff]
    %v153 = vld [vmem:[#allocation4 + $0x80] sm:$0xff]
    %v154 = vld [vmem:[#allocation4 + $0x88] sm:$0xff]
    %v155 = vld [vmem:[#allocation4 + $0x90] sm:$0xff]
    %v156 = vld [vmem:[#allocation4 + $0x98] sm:$0xff]
    %v157 = vld [vmem:[#allocation4 + $0xa0] sm:$0xff]
    %v158 = vld [vmem:[#allocation4 + $0xa8] sm:$0xff]
    %v159 = vld [vmem:[#allocation4 + $0xb0] sm:$0xff]
    %v160 = vld [vmem:[#allocation4 + $0xb8] sm:$0xff]
    %v161 = vld [vmem:[#allocation4 + $0xc0] sm:$0xff]
    %v162 = vld [vmem:[#allocation4 + $0xc8] sm:$0xff]
    %v163 = vld [vmem:[#allocation4 + $0xd0] sm:$0xff]
    %v164 = vld [vmem:[#allocation4 + $0xd8] sm:$0xff]
    %v165 = vld [vmem:[#allocation4 + $0xe0] sm:$0xff]
    %v166 = vld [vmem:[#allocation4 + $0xe8] sm:$0xff]
    %v167 = vld [vmem:[#allocation4 + $0xf0] sm:$0xff]
    %v168 = vld [vmem:[#allocation4 + $0xf8] sm:$0xff]
    %v169 = vld [vmem:[%s4] sm:$0x3]
    %v171 = vlaneseq
    %v172 = vshrl.u32 %v171, 7
    %v173 = vsub.s32 0, %v172
    %v174 = vrot.slane %v169, %v173
    %v175 = vlaneseq
    %v176 = vshrl.u32 %v175, 7
    %v177 = vsub.s32 1, %v176
    %v178 = vrot.slane %v169, %v177
    %v213 = vunpack.c.l.b16 %v137
    %v214 = vunpack.c.h.b16 %v137
    %v215 = vunpack.c.l.b16 %v138
    %v216 = vunpack.c.h.b16 %v138
    %v217 = vunpack.c.l.b16 %v139
    %v218 = vunpack.c.h.b16 %v139
    %v219 = vunpack.c.l.b16 %v140
    %v220 = vunpack.c.h.b16 %v140
    %v221 = vunpack.c.l.b16 %v141
    %v222 = vunpack.c.h.b16 %v141
    %v223 = vunpack.c.l.b16 %v142
    %v224 = vunpack.c.h.b16 %v142
    %v225 = vunpack.c.l.b16 %v143
    %v226 = vunpack.c.h.b16 %v143
    %v227 = vunpack.c.l.b16 %v144
    %v228 = vunpack.c.h.b16 %v144
    %v229 = vunpack.c.l.b16 %v145
    %v230 = vunpack.c.h.b16 %v145
    %v231 = vunpack.c.l.b16 %v146
    %v232 = vunpack.c.h.b16 %v146
    %v233 = vunpack.c.l.b16 %v147
    %v234 = vunpack.c.h.b16 %v147
    %v235 = vunpack.c.l.b16 %v148
    %v236 = vunpack.c.h.b16 %v148
    %v237 = vunpack.c.l.b16 %v149
    %v238 = vunpack.c.h.b16 %v149
    %v239 = vunpack.c.l.b16 %v150
    %v240 = vunpack.c.h.b16 %v150
    %v241 = vunpack.c.l.b16 %v151
    %v242 = vunpack.c.h.b16 %v151
    %v243 = vunpack.c.l.b16 %v152
    %v244 = vunpack.c.h.b16 %v152
    %v245 = vunpack.c.l.b16 %v153
    %v246 = vunpack.c.h.b16 %v153
    %v247 = vunpack.c.l.b16 %v154
    %v248 = vunpack.c.h.b16 %v154
    %v249 = vunpack.c.l.b16 %v155
    %v250 = vunpack.c.h.b16 %v155
    %v251 = vunpack.c.l.b16 %v156
    %v252 = vunpack.c.h.b16 %v156
    %v253 = vunpack.c.l.b16 %v157
    %v254 = vunpack.c.h.b16 %v157
    %v255 = vunpack.c.l.b16 %v158
    %v256 = vunpack.c.h.b16 %v158
    %v257 = vunpack.c.l.b16 %v159
    %v258 = vunpack.c.h.b16 %v159
    %v259 = vunpack.c.l.b16 %v160
    %v260 = vunpack.c.h.b16 %v160
    %v261 = vunpack.c.l.b16 %v161
    %v262 = vunpack.c.h.b16 %v161
    %v263 = vunpack.c.l.b16 %v162
    %v264 = vunpack.c.h.b16 %v162
    %v265 = vunpack.c.l.b16 %v163
    %v266 = vunpack.c.h.b16 %v163
    %v267 = vunpack.c.l.b16 %v164
    %v268 = vunpack.c.h.b16 %v164
    %v269 = vunpack.c.l.b16 %v165
    %v270 = vunpack.c.h.b16 %v165
    %v271 = vunpack.c.l.b16 %v166
    %v272 = vunpack.c.h.b16 %v166
    %v273 = vunpack.c.l.b16 %v167
    %v274 = vunpack.c.h.b16 %v167
    %v275 = vunpack.c.l.b16 %v168
    %v276 = vunpack.c.h.b16 %v168
    %v277 = vpack.c.b16 %v215, %v213
    %v278 = vpack.c.b16 %v216, %v214
    %v279 = vpack.c.b16 %v219, %v217
    %v280 = vpack.c.b16 %v220, %v218
    %v281 = vpack.c.b16 %v223, %v221
    %v282 = vpack.c.b16 %v224, %v222
    %v283 = vpack.c.b16 %v227, %v225
    %v284 = vpack.c.b16 %v228, %v226
    %v285 = vpack.c.b16 %v231, %v229
    %v286 = vpack.c.b16 %v232, %v230
    %v287 = vpack.c.b16 %v235, %v233
    %v288 = vpack.c.b16 %v236, %v234
    %v289 = vpack.c.b16 %v239, %v237
    %v290 = vpack.c.b16 %v240, %v238
    %v291 = vpack.c.b16 %v243, %v241
    %v292 = vpack.c.b16 %v244, %v242
    %v293 = vpack.c.b16 %v247, %v245
    %v294 = vpack.c.b16 %v248, %v246
    %v295 = vpack.c.b16 %v251, %v249
    %v296 = vpack.c.b16 %v252, %v250
    %v297 = vpack.c.b16 %v255, %v253
    %v298 = vpack.c.b16 %v256, %v254
    %v299 = vpack.c.b16 %v259, %v257
    %v300 = vpack.c.b16 %v260, %v258
    %v301 = vpack.c.b16 %v263, %v261
    %v302 = vpack.c.b16 %v264, %v262
    %v303 = vpack.c.b16 %v267, %v265
    %v304 = vpack.c.b16 %v268, %v266
    %v305 = vpack.c.b16 %v271, %v269
    %v306 = vpack.c.b16 %v272, %v270
    %v307 = vpack.c.b16 %v275, %v273
    %v308 = vpack.c.b16 %v276, %v274
    %341 = vmatprep.subr.bf16.mxu0 %v292
    %342 = vmatpush1.bf16.msra.mxu0 %v291
    %343 = vmatprep.subr.bf16.mxu0 %v290
    %344 = vmatpush1.bf16.msra.mxu0 %v289
    %345 = vmatprep.subr.bf16.mxu0 %v288
    %346 = vmatpush1.bf16.msra.mxu0 %v287
    %347 = vmatprep.subr.bf16.mxu0 %v286
    %348 = vmatpush1.bf16.msra.mxu0 %v285
    %349 = vmatprep.subr.bf16.mxu0 %v284
    %350 = vmatpush1.bf16.msra.mxu0 %v283
    %351 = vmatprep.subr.bf16.mxu0 %v282
    %352 = vmatpush1.bf16.msra.mxu0 %v281
    %353 = vmatprep.subr.bf16.mxu0 %v280
    %354 = vmatpush1.bf16.msra.mxu0 %v279
    %355 = vmatprep.subr.bf16.mxu0 %v278
    %356 = vmatpush1.bf16.msra.mxu0 %v277
    %357 = vmatprep.subr.bf16.mxu0 %v308
    %358 = vmatpush2.bf16.msra.mxu0 %v307
    %359 = vmatprep.subr.bf16.mxu0 %v306
    %360 = vmatpush2.bf16.msra.mxu0 %v305
    %361 = vmatprep.subr.bf16.mxu0 %v304
    %362 = vmatpush2.bf16.msra.mxu0 %v303
    %363 = vmatprep.subr.bf16.mxu0 %v302
    %364 = vmatpush2.bf16.msra.mxu0 %v301
    %365 = vmatprep.subr.bf16.mxu0 %v300
    %366 = vmatpush2.bf16.msra.mxu0 %v299
    %367 = vmatprep.subr.bf16.mxu0 %v298
    %368 = vmatpush2.bf16.msra.mxu0 %v297
    %369 = vmatprep.subr.bf16.mxu0 %v296
    %370 = vmatpush2.bf16.msra.mxu0 %v295
    %371 = vmatprep.subr.bf16.mxu0 %v294
    %372 = vmatpush2.bf16.msra.mxu0 %v293
    %373 = vmatprep.mubr.bf16.mxu0 %v136
    %374 = vmatmul.mubr.bf16.gmra.mxu0 %v135
    %v375 = vpop.f32.mrf.mxu0
    %v376 = vadd.f32 %v174, %v375
    %v377 = vpop.f32.mrf.mxu0
    %v378 = vadd.f32 %v178, %v377
    %v379 = vpop.f32.mrf.mxu0
    %v380 = vpop.f32.mrf.mxu0
    %381 = vdwg.mxu0
    %v382 = vpack.c.bf16 %v376, %v376
    %v383 = vpack.c.bf16 %v378, %v378
    %v386 = vunpack.c.l.b16 %v382
    %v387 = vunpack.c.l.b16 %v383
    %v388 = vpack.c.b16 %v387, %v386
    %390 = vst [vmem:[%s5] sm:$0xff] %v388
    // Predicated region
    $region30: #{mlp_forward.1} parent=1 // pred_check
      _
    $region31: #{mlp_forward.1} parent=1 // pred_check_branch
      %392 = sbr.rel (0) target = $region33
    $region32: #{mlp_forward.1} parent=1 // pred_region
      _
    $region33: #{mlp_forward.1} parent=1 // pred_fallthru
      _
    // Predicated region
    $region34: #{mlp_forward.1} parent=1 // pred_check
      _
    $region35: #{mlp_forward.1} parent=1 // pred_check_branch
      %394 = sbr.rel (0) target = $region37
    $region36: #{mlp_forward.1} parent=1 // pred_region
      _
    $region37: #{mlp_forward.1} parent=1 // pred_fallthru
      _
    %395 = vsyncpa [#allocation3], 1
    %396 = vsyncpa [#allocation5], 1

</llo_original>
